<compile_context>
chip_gen: v5e
topology: v5e:2x2
jax: 0.10.0
libtpu: 0.0.40
codegen_flags: <defaults>
</compile_context>

<pallas_src>
import functools

import jax
import jax.numpy as jnp
from jax.experimental import pallas as pl
from jax.experimental.pallas import tpu as pltpu


def _attention_kernel(video_ref, audio_ref,
                      wa1_ref, ba1_ref,     # affine_audio_1    (128 -> V)
                      wv1_ref, bv1_ref,     # affine_video_1    (V   -> V)
                      wbn_ref, bbn_ref,     # affine_bottleneck (V   -> 256)
                      wvc_ref, bvc_ref,     # affine_v_c_att    (256 -> V)
                      out_ref, *, hw_valid):
    tb, hwp, v_dim = video_ref.shape
    vis = video_ref[...]                     # [TB, HWp, V]  (compute dtype)
    aud = audio_ref[...]                     # [TB, 128]     (compute dtype)

    # audio_query_1 = relu(audio @ Wa1 + ba1)                  -> [TB, V]
    aq1 = jnp.maximum(
        jnp.dot(aud, wa1_ref[...], preferred_element_type=jnp.float32)
        + ba1_ref[...], 0.0)

    # video_query_1 = relu(vis @ Wv1 + bv1)                    -> [TB, HWp, V]
    vq1 = jnp.maximum(
        jnp.dot(vis.reshape(tb * hwp, v_dim), wv1_ref[...],
                preferred_element_type=jnp.float32)
        + bv1_ref[...], 0.0).reshape(tb, hwp, v_dim)

    # audio_video_query_raw = mean over valid spatial positions -> [TB, V]
    prod = aq1[:, None, :] * vq1                               # [TB, HWp, V] f32
    if hwp == hw_valid:
        avq_raw = jnp.mean(prod, axis=1)
    else:
        row = jax.lax.broadcasted_iota(jnp.int32, (hwp, v_dim), 0)
        mask = (row < hw_valid).astype(jnp.float32)            # [HWp, V]
        avq_raw = jnp.sum(prod * mask, axis=1) * (1.0 / hw_valid)

    # audio_video_query = relu(bottleneck)                      -> [TB, 256]
    avq = jnp.maximum(
        jnp.dot(avq_raw.astype(wbn_ref.dtype), wbn_ref[...],
                preferred_element_type=jnp.float32)
        + bbn_ref[...], 0.0)

    # channel_att_maps = sigmoid(v_c_att)                       -> [TB, V]
    ch_att = jax.nn.sigmoid(
        jnp.dot(avq.astype(wvc_ref.dtype), wvc_ref[...],
                preferred_element_type=jnp.float32)
        + bvc_ref[...])

    # c_att_visual_feat = vis * (channel_att + 1)               -> [TB, HWp, V]
    # The PyTorch spatial branch multiplies by softmax over a size-1 axis,
    # which is identically 1.0 -> the output is exactly c_att (bit-identical).
    c_att = vis.astype(jnp.float32) * (ch_att[:, None, :] + 1.0)
    out_ref[...] = c_att.astype(out_ref.dtype)


def _full_spec(shape):
    nd = len(shape)
    return pl.BlockSpec(shape, lambda i, _nd=nd: (0,) * _nd)


def _choose_tb(bt, hwp, v_dim, itemsize, tile_budget=2 << 20):
    """Largest divisor of BT whose video tile fits the budget; keep grid>=2
    (preferably even) so both v7x TensorCores get work."""
    divisors = [d for d in range(1, bt + 1) if bt % d == 0]
    fits = [d for d in divisors if d * hwp * v_dim * itemsize <= tile_budget]
    if not fits:
        return 1
    multi = [d for d in fits if bt // d >= 2]
    pool = multi if multi else fits
    even = [d for d in pool if (bt // d) % 2 == 0]
    return max(even) if even else max(pool)


def audio_guided_attention(video, audio, params, *,
                           compute_dtype=jnp.bfloat16, tb=None):
    """video: [B, V, T, H, W], audio: [B, T, 128] -> [B*T, H*W, V]"""
    B, V, T, H, W = video.shape
    assert audio.shape == (B, T, 128)
    HW, BT = H * W, B * T
    out_dtype = video.dtype

    # glue: same permute/reshape the PyTorch module performs.
    # Cast BEFORE the transpose so the permute moves half the HBM bytes (bf16).
    vis = jnp.transpose(video.astype(compute_dtype),
                        (0, 2, 3, 4, 1)).reshape(BT, HW, V)
    aud = audio.astype(compute_dtype).reshape(BT, 128)

    # pad spatial dim to a multiple of 8 sublanes (masked mean in the kernel)
    HWp = ((HW + 7) // 8) * 8
    if HWp != HW:
        vis = jnp.pad(vis, ((0, 0), (0, HWp - HW), (0, 0)))

    if tb is None:
        tb = _choose_tb(BT, HWp, V, jnp.dtype(compute_dtype).itemsize)
    assert BT % tb == 0
    grid = (BT // tb,)

    # Only the live layers (matrices in compute dtype, biases kept f32).
    w_mats = [params["wa1"], params["wv1"], params["wbn"], params["wvc"]]
    w_bias = [params["ba1"], params["bv1"], params["bbn"], params["bvc"]]
    weight_args = []
    for wm, wb in zip(w_mats, w_bias):
        weight_args += [wm.astype(compute_dtype), wb.astype(jnp.float32)]

    in_specs = ([pl.BlockSpec((tb, HWp, V), lambda i: (i, 0, 0)),
                 pl.BlockSpec((tb, 128), lambda i: (i, 0))]
                + [_full_spec(w.shape) for w in weight_args])
    out_spec = pl.BlockSpec((tb, HWp, V), lambda i: (i, 0, 0))

    fn = pl.pallas_call(
        functools.partial(_attention_kernel, hw_valid=HW),
        out_shape=jax.ShapeDtypeStruct((BT, HWp, V), out_dtype),
        grid_spec=pltpu.PrefetchScalarGridSpec(
            num_scalar_prefetch=0,
            grid=grid,
            in_specs=in_specs,
            out_specs=out_spec,
        ),
        compiler_params=pltpu.CompilerParams(
            dimension_semantics=("parallel",),
            vmem_limit_bytes=32 * 1024 * 1024),
    )
    out = fn(vis, aud, *weight_args)
    if HWp != HW:
        out = out[:, :HW, :]
    return out


def init_params(key, v_dim):
    """PyTorch-Linear-style uniform(-1/sqrt(fan_in), 1/sqrt(fan_in)) init.
    Weights stored transposed as [in, out]; biases as [1, out]."""
    defs = {
        "a1": (128, v_dim),
        "v1": (v_dim, v_dim),
        "bn": (v_dim, 256),
        "vc": (256, v_dim),
        "a2": (128, 256),
        "v2": (v_dim, 256),
        "vs": (256, 1),
    }
    params = {}
    for name, (fin, fout) in defs.items():
        key, kw, kb = jax.random.split(key, 3)
        bound = 1.0 / (fin ** 0.5)
        params["w" + name] = jax.random.uniform(
            kw, (fin, fout), jnp.float32, -bound, bound)
        params["b" + name] = jax.random.uniform(
            kb, (1, fout), jnp.float32, -bound, bound)
    return params


def reference(video, audio, params):
    """Pure-JAX replica of the full PyTorch forward (incl. the spatial branch),
    for verification."""
    B, V, T, H, W = video.shape
    HW, BT = H * W, B * T
    vis = jnp.transpose(video, (0, 2, 3, 4, 1)).reshape(BT, HW, V)
    aud = audio.reshape(BT, 128)

    relu = jax.nn.relu
    aq1 = relu(aud @ params["wa1"] + params["ba1"])[:, None, :]         # [BT,1,V]
    vq1 = relu(vis @ params["wv1"] + params["bv1"])                     # [BT,HW,V]
    avq_raw = jnp.mean(aq1 * vq1, axis=-2)                              # [BT,V]
    avq = relu(avq_raw @ params["wbn"] + params["bbn"])                 # [BT,256]
    ch_att = jax.nn.sigmoid(avq @ params["wvc"] + params["bvc"])[:, None, :]
    c_att = vis * (ch_att + 1.0)                                        # [BT,HW,V]
    aq2 = relu(aud @ params["wa2"] + params["ba2"])[:, None, :]         # [BT,1,256]
    cq = relu(c_att @ params["wv2"] + params["bv2"])                    # [BT,HW,256]
    s = jax.nn.softmax(jnp.tanh((cq * aq2) @ params["wvs"] + params["bvs"]),
                       axis=-1)                                         # [BT,HW,1]
    return c_att * s


if __name__ == "__main__":
    key = jax.random.PRNGKey(0)
    B, T, H, W, V = 2, 8, 4, 4, 128   # small shapes; V = hidden_size (v_dim)

    kv, ka, kp = jax.random.split(key, 3)
    video = jax.random.normal(kv, (B, V, T, H, W), jnp.float32)
    audio = jax.random.normal(ka, (B, T, 128), jnp.float32)
    params = init_params(kp, V)
    ref = reference(video, audio, params)

    # exact f32 compute path -> tight check against the full reference
    out_f32 = jax.block_until_ready(
        audio_guided_attention(video, audio, params,
                               compute_dtype=jnp.float32))
    assert out_f32.shape == (B * T, H * W, V), out_f32.shape
    assert jnp.allclose(out_f32, ref, atol=1e-4, rtol=1e-4), \
        float(jnp.max(jnp.abs(out_f32 - ref)))

    # fast bf16 path (f32 accumulation) -> loose check
    out_bf16 = jax.block_until_ready(
        audio_guided_attention(video, audio, params,
                               compute_dtype=jnp.bfloat16))
    assert out_bf16.shape == (B * T, H * W, V), out_bf16.shape
    assert jnp.allclose(out_bf16, ref, atol=5e-2, rtol=5e-2), \
        float(jnp.max(jnp.abs(out_bf16 - ref)))

    # 7x7 spatial grid (module's documented shape): exercises pad+masked mean
    H2 = W2 = 7
    kv2 = jax.random.fold_in(kv, 1)
    video2 = jax.random.normal(kv2, (B, V, T, H2, W2), jnp.float32)
    ref2 = reference(video2, audio, params)
    out2 = jax.block_until_ready(
        audio_guided_attention(video2, audio, params,
                               compute_dtype=jnp.float32))
    assert out2.shape == (B * T, H2 * W2, V), out2.shape
    assert jnp.allclose(out2, ref2, atol=1e-4, rtol=1e-4), \
        float(jnp.max(jnp.abs(out2 - ref2)))

    print("KERNEL_OK")
</pallas_src>

<mosaic_0001>
module attributes {stable_mosaic.version = 11 : i64} {
  func.func @_attention_kernel(%arg0: i32, %arg1: memref<8x16x128xf32, #tpu.memory_space<vmem>>, %arg2: memref<8x128xf32, #tpu.memory_space<vmem>>, %arg3: memref<128x128xf32, #tpu.memory_space<vmem>>, %arg4: memref<1x128xf32, #tpu.memory_space<vmem>>, %arg5: memref<128x128xf32, #tpu.memory_space<vmem>>, %arg6: memref<1x128xf32, #tpu.memory_space<vmem>>, %arg7: memref<128x256xf32, #tpu.memory_space<vmem>>, %arg8: memref<1x256xf32, #tpu.memory_space<vmem>>, %arg9: memref<256x128xf32, #tpu.memory_space<vmem>>, %arg10: memref<1x128xf32, #tpu.memory_space<vmem>>, %arg11: memref<8x16x128xf32, #tpu.memory_space<vmem>>) attributes {dimension_semantics = [#tpu.dimension_semantics<parallel>], iteration_bounds = array<i64: 2>, scalar_prefetch = 0 : i64, scratch_operands = 0 : i64, tpu.core_type = #tpu.core_type<tc>, window_params = [{transform_indices = @transform_0, window_bounds = array<i64: 8, 16, 128>}, {transform_indices = @transform_1, window_bounds = array<i64: 8, 128>}, {pipeline_mode = #tpu.pipeline_mode<synchronous>, transform_indices = @transform_2, window_bounds = array<i64: 128, 128>}, {pipeline_mode = #tpu.pipeline_mode<synchronous>, transform_indices = @transform_3, window_bounds = array<i64: 1, 128>}, {pipeline_mode = #tpu.pipeline_mode<synchronous>, transform_indices = @transform_4, window_bounds = array<i64: 128, 128>}, {pipeline_mode = #tpu.pipeline_mode<synchronous>, transform_indices = @transform_5, window_bounds = array<i64: 1, 128>}, {pipeline_mode = #tpu.pipeline_mode<synchronous>, transform_indices = @transform_6, window_bounds = array<i64: 128, 256>}, {pipeline_mode = #tpu.pipeline_mode<synchronous>, transform_indices = @transform_7, window_bounds = array<i64: 1, 256>}, {pipeline_mode = #tpu.pipeline_mode<synchronous>, transform_indices = @transform_8, window_bounds = array<i64: 256, 128>}, {pipeline_mode = #tpu.pipeline_mode<synchronous>, transform_indices = @transform_9, window_bounds = array<i64: 1, 128>}, {transform_indices = @transform_10, window_bounds = array<i64: 8, 16, 128>}]} {
    %c0 = arith.constant 0 : index
    %c0_0 = arith.constant 0 : index
    %c0_1 = arith.constant 0 : index
    %0 = vector.load %arg1[%c0, %c0_0, %c0_1] : memref<8x16x128xf32, #tpu.memory_space<vmem>>, vector<8x16x128xf32>
    %c0_2 = arith.constant 0 : index
    %c0_3 = arith.constant 0 : index
    %1 = vector.load %arg2[%c0_2, %c0_3] : memref<8x128xf32, #tpu.memory_space<vmem>>, vector<8x128xf32>
    %c0_4 = arith.constant 0 : index
    %c0_5 = arith.constant 0 : index
    %2 = vector.load %arg3[%c0_4, %c0_5] : memref<128x128xf32, #tpu.memory_space<vmem>>, vector<128x128xf32>
    %cst = arith.constant dense<0.000000e+00> : vector<8x128xf32>
    %3 = tpu.matmul %1, %2, %cst {dimension_numbers = #tpu.dot_dimension_numbers<[1], [0], [0], [1], [0, 0, 1, 1], [], []>} : vector<8x128xf32>, vector<128x128xf32>, vector<8x128xf32> -> vector<8x128xf32>
    %c0_6 = arith.constant 0 : index
    %c0_7 = arith.constant 0 : index
    %4 = vector.load %arg4[%c0_6, %c0_7] : memref<1x128xf32, #tpu.memory_space<vmem>>, vector<1x128xf32>
    %5 = vector.broadcast %4 : vector<1x128xf32> to vector<8x128xf32>
    %6 = arith.addf %3, %5 : vector<8x128xf32>
    %cst_8 = arith.constant 0.000000e+00 : f32
    %7 = vector.broadcast %cst_8 : f32 to vector<8x128xf32>
    %8 = arith.maximumf %6, %7 : vector<8x128xf32>
    %9 = vector.shape_cast %0 : vector<8x16x128xf32> to vector<128x128xf32>
    %c0_9 = arith.constant 0 : index
    %c0_10 = arith.constant 0 : index
    %10 = vector.load %arg5[%c0_9, %c0_10] : memref<128x128xf32, #tpu.memory_space<vmem>>, vector<128x128xf32>
    %cst_11 = arith.constant dense<0.000000e+00> : vector<128x128xf32>
    %11 = tpu.matmul %9, %10, %cst_11 {dimension_numbers = #tpu.dot_dimension_numbers<[1], [0], [0], [1], [0, 0, 1, 1], [], []>} : vector<128x128xf32>, vector<128x128xf32>, vector<128x128xf32> -> vector<128x128xf32>
    %c0_12 = arith.constant 0 : index
    %c0_13 = arith.constant 0 : index
    %12 = vector.load %arg6[%c0_12, %c0_13] : memref<1x128xf32, #tpu.memory_space<vmem>>, vector<1x128xf32>
    %13 = vector.broadcast %12 : vector<1x128xf32> to vector<128x128xf32>
    %14 = arith.addf %11, %13 : vector<128x128xf32>
    %cst_14 = arith.constant 0.000000e+00 : f32
    %15 = vector.broadcast %cst_14 : f32 to vector<128x128xf32>
    %16 = arith.maximumf %14, %15 : vector<128x128xf32>
    %17 = vector.shape_cast %16 : vector<128x128xf32> to vector<8x16x128xf32>
    %18 = vector.shape_cast %8 : vector<8x128xf32> to vector<8x1x128xf32>
    %19 = vector.broadcast %18 : vector<8x1x128xf32> to vector<8x16x128xf32>
    %20 = arith.mulf %19, %17 : vector<8x16x128xf32>
    %cst_15 = arith.constant dense<0.000000e+00> : vector<8x128xf32>
    %21 = vector.multi_reduction <add>, %20, %cst_15 [1] : vector<8x16x128xf32> to vector<8x128xf32>
    %cst_16 = arith.constant 1.600000e+01 : f32
    %22 = vector.broadcast %cst_16 : f32 to vector<8x128xf32>
    %23 = arith.divf %21, %22 : vector<8x128xf32>
    %c0_17 = arith.constant 0 : index
    %c0_18 = arith.constant 0 : index
    %24 = vector.load %arg7[%c0_17, %c0_18] : memref<128x256xf32, #tpu.memory_space<vmem>>, vector<128x256xf32>
    %cst_19 = arith.constant dense<0.000000e+00> : vector<8x256xf32>
    %25 = tpu.matmul %23, %24, %cst_19 {dimension_numbers = #tpu.dot_dimension_numbers<[1], [0], [0], [1], [0, 0, 1, 1], [], []>} : vector<8x128xf32>, vector<128x256xf32>, vector<8x256xf32> -> vector<8x256xf32>
    %c0_20 = arith.constant 0 : index
    %c0_21 = arith.constant 0 : index
    %26 = vector.load %arg8[%c0_20, %c0_21] : memref<1x256xf32, #tpu.memory_space<vmem>>, vector<1x256xf32>
    %27 = vector.broadcast %26 : vector<1x256xf32> to vector<8x256xf32>
    %28 = arith.addf %25, %27 : vector<8x256xf32>
    %cst_22 = arith.constant 0.000000e+00 : f32
    %29 = vector.broadcast %cst_22 : f32 to vector<8x256xf32>
    %30 = arith.maximumf %28, %29 : vector<8x256xf32>
    %c0_23 = arith.constant 0 : index
    %c0_24 = arith.constant 0 : index
    %31 = vector.load %arg9[%c0_23, %c0_24] : memref<256x128xf32, #tpu.memory_space<vmem>>, vector<256x128xf32>
    %cst_25 = arith.constant dense<0.000000e+00> : vector<8x128xf32>
    %32 = tpu.matmul %30, %31, %cst_25 {dimension_numbers = #tpu.dot_dimension_numbers<[1], [0], [0], [1], [0, 0, 1, 1], [], []>} : vector<8x256xf32>, vector<256x128xf32>, vector<8x128xf32> -> vector<8x128xf32>
    %c0_26 = arith.constant 0 : index
    %c0_27 = arith.constant 0 : index
    %33 = vector.load %arg10[%c0_26, %c0_27] : memref<1x128xf32, #tpu.memory_space<vmem>>, vector<1x128xf32>
    %34 = vector.broadcast %33 : vector<1x128xf32> to vector<8x128xf32>
    %35 = arith.addf %32, %34 : vector<8x128xf32>
    %36 = arith.negf %35 : vector<8x128xf32>
    %37 = math.exp %36 : vector<8x128xf32>
    %cst_28 = arith.constant 1.000000e+00 : f32
    %38 = vector.broadcast %cst_28 : f32 to vector<8x128xf32>
    %39 = arith.addf %38, %37 : vector<8x128xf32>
    %40 = arith.divf %38, %39 : vector<8x128xf32>
    %41 = vector.shape_cast %40 : vector<8x128xf32> to vector<8x1x128xf32>
    %cst_29 = arith.constant 1.000000e+00 : f32
    %42 = vector.broadcast %cst_29 : f32 to vector<8x1x128xf32>
    %43 = arith.addf %41, %42 : vector<8x1x128xf32>
    %44 = vector.broadcast %43 : vector<8x1x128xf32> to vector<8x16x128xf32>
    %45 = arith.mulf %0, %44 : vector<8x16x128xf32>
    %c0_30 = arith.constant 0 : index
    %c0_31 = arith.constant 0 : index
    %c0_32 = arith.constant 0 : index
    %46 = vector.load %arg11[%c0_30, %c0_31, %c0_32] : memref<8x16x128xf32, #tpu.memory_space<vmem>>, vector<8x16x128xf32>
    tpu.vector_store %arg11[%c0_30, %c0_31, %c0_32], %45 {strides = array<i32>} : memref<8x16x128xf32, #tpu.memory_space<vmem>>, vector<8x16x128xf32>,
    return
  }
  func.func @transform_0(%arg0: i32) -> (i32, i32, i32) {
    %c0_i32 = arith.constant 0 : i32
    %c0_i32_0 = arith.constant 0 : i32
    %c0_i32_1 = arith.constant 0 : i32
    return %arg0, %c0_i32, %c0_i32_0 : i32, i32, i32
  }
  func.func @transform_1(%arg0: i32) -> (i32, i32) {
    %c0_i32 = arith.constant 0 : i32
    %c0_i32_0 = arith.constant 0 : i32
    return %arg0, %c0_i32 : i32, i32
  }
  func.func @transform_2(%arg0: i32) -> (i32, i32) {
    %c0_i32 = arith.constant 0 : i32
    %c0_i32_0 = arith.constant 0 : i32
    %c0_i32_1 = arith.constant 0 : i32
    return %c0_i32, %c0_i32_0 : i32, i32
  }
  func.func @transform_3(%arg0: i32) -> (i32, i32) {
    %c0_i32 = arith.constant 0 : i32
    %c0_i32_0 = arith.constant 0 : i32
    %c0_i32_1 = arith.constant 0 : i32
    return %c0_i32, %c0_i32_0 : i32, i32
  }
  func.func @transform_4(%arg0: i32) -> (i32, i32) {
    %c0_i32 = arith.constant 0 : i32
    %c0_i32_0 = arith.constant 0 : i32
    %c0_i32_1 = arith.constant 0 : i32
    return %c0_i32, %c0_i32_0 : i32, i32
  }
  func.func @transform_5(%arg0: i32) -> (i32, i32) {
    %c0_i32 = arith.constant 0 : i32
    %c0_i32_0 = arith.constant 0 : i32
    %c0_i32_1 = arith.constant 0 : i32
    return %c0_i32, %c0_i32_0 : i32, i32
  }
  func.func @transform_6(%arg0: i32) -> (i32, i32) {
    %c0_i32 = arith.constant 0 : i32
    %c0_i32_0 = arith.constant 0 : i32
    %c0_i32_1 = arith.constant 0 : i32
    return %c0_i32, %c0_i32_0 : i32, i32
  }
  func.func @transform_7(%arg0: i32) -> (i32, i32) {
    %c0_i32 = arith.constant 0 : i32
    %c0_i32_0 = arith.constant 0 : i32
    %c0_i32_1 = arith.constant 0 : i32
    return %c0_i32, %c0_i32_0 : i32, i32
  }
  func.func @transform_8(%arg0: i32) -> (i32, i32) {
    %c0_i32 = arith.constant 0 : i32
    %c0_i32_0 = arith.constant 0 : i32
    %c0_i32_1 = arith.constant 0 : i32
    return %c0_i32, %c0_i32_0 : i32, i32
  }
  func.func @transform_9(%arg0: i32) -> (i32, i32) {
    %c0_i32 = arith.constant 0 : i32
    %c0_i32_0 = arith.constant 0 : i32
    %c0_i32_1 = arith.constant 0 : i32
    return %c0_i32, %c0_i32_0 : i32, i32
  }
  func.func @transform_10(%arg0: i32) -> (i32, i32, i32) {
    %c0_i32 = arith.constant 0 : i32
    %c0_i32_0 = arith.constant 0 : i32
    %c0_i32_1 = arith.constant 0 : i32
    return %arg0, %c0_i32, %c0_i32_0 : i32, i32, i32
  }
}

</mosaic_0001>

<llo_original>
// kernel: tpu_custom_call.1
$region0: #{tpu_custom_call.1}
  #allocation0 [shape = 'u32[]', space=smem, size = 0x4, offset = 0x4, fixed_abs, tag = 'smem constant byte address 0x4 - core index']
  #allocation1 [shape = 'u32[72,128]{1,0:T(1,128)}', space=vmem, size = 0x9000, scoped, tag = 'internal scratch']
  %s0 = inlined_call_operand.hbm [shape: f32[16,16,128], index: 0, kind: input, shape index: {}]
  %s1 = inlined_call_operand.hbm [shape: f32[16,128], index: 1, kind: input, shape index: {}]
  %s2 = inlined_call_operand.hbm [shape: f32[128,128], index: 2, kind: input, shape index: {}]
  %s3 = inlined_call_operand.vmem [shape: f32[1,128], index: 3, kind: input, shape index: {}]
  %s4 = inlined_call_operand.hbm [shape: f32[128,128], index: 4, kind: input, shape index: {}]
  %s5 = inlined_call_operand.vmem [shape: f32[1,128], index: 5, kind: input, shape index: {}]
  %s6 = inlined_call_operand.hbm [shape: f32[128,256], index: 6, kind: input, shape index: {}]
  %s7 = inlined_call_operand.vmem [shape: f32[1,256], index: 7, kind: input, shape index: {}]
  %s8 = inlined_call_operand.hbm [shape: f32[256,128], index: 8, kind: input, shape index: {}]
  %s9 = inlined_call_operand.vmem [shape: f32[1,128], index: 9, kind: input, shape index: {}]
  %s10 = inlined_call_operand.hbm [shape: f32[16,16,128], index: 10, kind: output, shape index: {}]
  %s11 = sld [smem:[#allocation0]]
  $region97: #{tpu_custom_call.1} parent=0
    _
  %s13 = ssub.s32 1, %s11
  %s14 = scalar_select 0, %s13, %s11
  $region1: #{tpu_custom_call.1} parent=0
    #allocation2 [shape = 'u8[131072]{0}', space=vmem, size = 0x20000, scoped, tag = 'input window, operand 0']
    #allocation3 [shape = 's32[2]{0}', space=sflag, size = 0x8, scoped, tag = 'scoped memory for tpu_custom_call.1']
    #allocation4 [shape = 's32[2]{0}', space=sflag, size = 0x8, scoped, tag = 'scoped memory for tpu_custom_call.1']
    #allocation5 [shape = 'u8[8192]{0}', space=vmem, size = 0x2000, scoped, tag = 'input window, operand 1']
    #allocation6 [shape = 's32[2]{0}', space=sflag, size = 0x8, scoped, tag = 'scoped memory for tpu_custom_call.1']
    #allocation7 [shape = 'u8[65536]{0}', space=vmem, size = 0x10000, scoped, tag = 'input window, operand 2, single buffered']
    #allocation8 [shape = 'u8[65536]{0}', space=vmem, size = 0x10000, scoped, tag = 'input window, operand 4, single buffered']
    #allocation9 [shape = 's32[1]{0}', space=sflag, size = 0x4, scoped, tag = 'scoped memory for tpu_custom_call.1']
    #allocation10 [shape = 'u8[131072]{0}', space=vmem, size = 0x20000, scoped, tag = 'input window, operand 6, single buffered']
    #allocation11 [shape = 'u8[131072]{0}', space=vmem, size = 0x20000, scoped, tag = 'input window, operand 8, single buffered']
    #allocation12 [shape = 's32[1]{0}', space=sflag, size = 0x4, scoped, tag = 'scoped memory for tpu_custom_call.1']
    #allocation13 [shape = 'u8[131072]{0}', space=vmem, size = 0x20000, scoped, tag = 'output window, operand 0']
    %15 = vsyncpa [#allocation3], 0
    %s16 = scalar_lea.sflag [#allocation3], 1
    %17 = vsyncpa %s16, 0
    %18 = vsyncpa [#allocation6], 0
    %s19 = scalar_lea.sflag [#allocation6], 1
    %20 = vsyncpa %s19, 0
    %21 = vsyncpa [#allocation9], 0
    %22 = vsyncpa [#allocation12], 0
    %23 = vsyncpa [#allocation4], 0
    %s24 = scalar_lea.sflag [#allocation4], 1
    %25 = vsyncpa %s24, 0
    loop: start=0, step=1, limit=4
    $region2: #{tpu_custom_call.1} parent=1 // loop_pre_header
      _
    $region3: #{tpu_custom_call.1} parent=1 // loop_header
      %s27 = sphi 0, %s31
      %p28 = scmp.ge.s32.totalorder %s27, 4
      %s37 = sphi 0, %s39
      %s40 = sphi 0, %s37
      %s41 = sphi 0, %s40
      %s57 = sphi 0, %s41
      %s63 = sphi 0, %s65
      %s66 = sphi 0, %s63
      %s67 = sphi 0, %s66
      %s83 = sphi 0, %s67
      %s87 = sphi 0, %s87
      %s89 = sphi 0, %s87
      %s90 = sphi 0, %s89
      %s104 = sphi 0, %s90
      %s108 = sphi 0, %s108
      %s110 = sphi 0, %s108
      %s111 = sphi 0, %s110
      %s125 = sphi 0, %s111
      %s129 = sphi 0, %s129
      %s131 = sphi 0, %s129
      %s132 = sphi 0, %s131
      %s146 = sphi 0, %s132
      %s150 = sphi 0, %s150
      %s152 = sphi 0, %s150
      %s153 = sphi 0, %s152
      %s167 = sphi 0, %s153
      %s171 = sphi 0, %s171
      %s173 = sphi 0, %s171
      %s174 = sphi 0, %s173
      %s188 = sphi 0, %s174
      %s192 = sphi 0, %s192
      %s194 = sphi 0, %s192
      %s195 = sphi 0, %s194
      %s209 = sphi 0, %s195
      %s213 = sphi 0, %s213
      %s215 = sphi 0, %s213
      %s216 = sphi 0, %s215
      %s230 = sphi 0, %s216
      %s234 = sphi 0, %s234
      %s236 = sphi 0, %s234
      %s237 = sphi 0, %s236
      %s251 = sphi 0, %s237
      %s257 = sphi 0, %s259
      %s260 = sphi 0, %s257
      %s261 = sphi 0, %s260
      %s277 = sphi 0, %s261
    $region4: #{tpu_custom_call.1} parent=1 // loop_header_branch
      %30 = sbr.rel (%p28) target = $region8
    $region5: #{tpu_custom_call.1} parent=1 // loop_body
      %s32 = ssub.s32 %s27, 1
      %s33 = ssub.s32 %s27, 2
      %s34 = sadd.s32 %s27, 1
      %s35 = ssub.s32 %s27, %s34
      %p36 = scmp.eq.s32.totalorder %s35, 0
      %s38 = sadd.s32 %s37, 1
      %s39 = scalar_select %p36, %s37, %s38
      %p42 = pneg %p36
      %p43 = scmp.eq.s32.totalorder %s27, 1
      %p44 = por %p42, %p43
      %p45 = scmp.ne.s32.totalorder %s37, %s40
      %p46 = scmp.eq.s32.totalorder %s27, 0
      %p47 = por %p45, %p46
      %p48 = scmp.ne.s32.totalorder %s37, %s40
      %p49 = scmp.eq.s32.totalorder %s32, 1
      %p50 = por %p48, %p49
      %p51 = scmp.ne.s32.totalorder %s40, %s41
      %p52 = scmp.eq.s32.totalorder %s32, 0
      %p53 = por %p51, %p52
      %p54 = scmp.ne.s32.totalorder %s40, %s41
      %p55 = scmp.eq.s32.totalorder %s33, 1
      %p56 = por %p54, %p55
      %p58 = scmp.ne.s32.totalorder %s41, %s57
      %p59 = scmp.eq.s32.totalorder %s33, 0
      %p60 = por %p58, %p59
      %s61 = ssub.s32 %s27, %s34
      %p62 = scmp.eq.s32.totalorder %s61, 0
      %s64 = sadd.s32 %s63, 1
      %s65 = scalar_select %p62, %s63, %s64
      %p68 = pneg %p62
      %p69 = scmp.eq.s32.totalorder %s27, 1
      %p70 = por %p68, %p69
      %p71 = scmp.ne.s32.totalorder %s63, %s66
      %p72 = scmp.eq.s32.totalorder %s27, 0
      %p73 = por %p71, %p72
      %p74 = scmp.ne.s32.totalorder %s63, %s66
      %p75 = scmp.eq.s32.totalorder %s32, 1
      %p76 = por %p74, %p75
      %p77 = scmp.ne.s32.totalorder %s66, %s67
      %p78 = scmp.eq.s32.totalorder %s32, 0
      %p79 = por %p77, %p78
      %p80 = scmp.ne.s32.totalorder %s66, %s67
      %p81 = scmp.eq.s32.totalorder %s33, 1
      %p82 = por %p80, %p81
      %p84 = scmp.ne.s32.totalorder %s67, %s83
      %p85 = scmp.eq.s32.totalorder %s33, 0
      %p86 = por %p84, %p85
      %s88 = sadd.s32 %s87, 1
      %p91 = scmp.eq.s32.totalorder %s27, 1
      %p92 = scmp.ne.s32.totalorder %s87, %s89
      %p93 = scmp.eq.s32.totalorder %s27, 0
      %p94 = por %p92, %p93
      %p95 = scmp.ne.s32.totalorder %s87, %s89
      %p96 = scmp.eq.s32.totalorder %s32, 1
      %p97 = por %p95, %p96
      %p98 = scmp.ne.s32.totalorder %s89, %s90
      %p99 = scmp.eq.s32.totalorder %s32, 0
      %p100 = por %p98, %p99
      %p101 = scmp.ne.s32.totalorder %s89, %s90
      %p102 = scmp.eq.s32.totalorder %s33, 1
      %p103 = por %p101, %p102
      %p105 = scmp.ne.s32.totalorder %s90, %s104
      %p106 = scmp.eq.s32.totalorder %s33, 0
      %p107 = por %p105, %p106
      %s109 = sadd.s32 %s108, 1
      %p112 = scmp.eq.s32.totalorder %s27, 1
      %p113 = scmp.ne.s32.totalorder %s108, %s110
      %p114 = scmp.eq.s32.totalorder %s27, 0
      %p115 = por %p113, %p114
      %p116 = scmp.ne.s32.totalorder %s108, %s110
      %p117 = scmp.eq.s32.totalorder %s32, 1
      %p118 = por %p116, %p117
      %p119 = scmp.ne.s32.totalorder %s110, %s111
      %p120 = scmp.eq.s32.totalorder %s32, 0
      %p121 = por %p119, %p120
      %p122 = scmp.ne.s32.totalorder %s110, %s111
      %p123 = scmp.eq.s32.totalorder %s33, 1
      %p124 = por %p122, %p123
      %p126 = scmp.ne.s32.totalorder %s111, %s125
      %p127 = scmp.eq.s32.totalorder %s33, 0
      %p128 = por %p126, %p127
      %s130 = sadd.s32 %s129, 1
      %p133 = scmp.eq.s32.totalorder %s27, 1
      %p134 = scmp.ne.s32.totalorder %s129, %s131
      %p135 = scmp.eq.s32.totalorder %s27, 0
      %p136 = por %p134, %p135
      %p137 = scmp.ne.s32.totalorder %s129, %s131
      %p138 = scmp.eq.s32.totalorder %s32, 1
      %p139 = por %p137, %p138
      %p140 = scmp.ne.s32.totalorder %s131, %s132
      %p141 = scmp.eq.s32.totalorder %s32, 0
      %p142 = por %p140, %p141
      %p143 = scmp.ne.s32.totalorder %s131, %s132
      %p144 = scmp.eq.s32.totalorder %s33, 1
      %p145 = por %p143, %p144
      %p147 = scmp.ne.s32.totalorder %s132, %s146
      %p148 = scmp.eq.s32.totalorder %s33, 0
      %p149 = por %p147, %p148
      %s151 = sadd.s32 %s150, 1
      %p154 = scmp.eq.s32.totalorder %s27, 1
      %p155 = scmp.ne.s32.totalorder %s150, %s152
      %p156 = scmp.eq.s32.totalorder %s27, 0
      %p157 = por %p155, %p156
      %p158 = scmp.ne.s32.totalorder %s150, %s152
      %p159 = scmp.eq.s32.totalorder %s32, 1
      %p160 = por %p158, %p159
      %p161 = scmp.ne.s32.totalorder %s152, %s153
      %p162 = scmp.eq.s32.totalorder %s32, 0
      %p163 = por %p161, %p162
      %p164 = scmp.ne.s32.totalorder %s152, %s153
      %p165 = scmp.eq.s32.totalorder %s33, 1
      %p166 = por %p164, %p165
      %p168 = scmp.ne.s32.totalorder %s153, %s167
      %p169 = scmp.eq.s32.totalorder %s33, 0
      %p170 = por %p168, %p169
      %s172 = sadd.s32 %s171, 1
      %p175 = scmp.eq.s32.totalorder %s27, 1
      %p176 = scmp.ne.s32.totalorder %s171, %s173
      %p177 = scmp.eq.s32.totalorder %s27, 0
      %p178 = por %p176, %p177
      %p179 = scmp.ne.s32.totalorder %s171, %s173
      %p180 = scmp.eq.s32.totalorder %s32, 1
      %p181 = por %p179, %p180
      %p182 = scmp.ne.s32.totalorder %s173, %s174
      %p183 = scmp.eq.s32.totalorder %s32, 0
      %p184 = por %p182, %p183
      %p185 = scmp.ne.s32.totalorder %s173, %s174
      %p186 = scmp.eq.s32.totalorder %s33, 1
      %p187 = por %p185, %p186
      %p189 = scmp.ne.s32.totalorder %s174, %s188
      %p190 = scmp.eq.s32.totalorder %s33, 0
      %p191 = por %p189, %p190
      %s193 = sadd.s32 %s192, 1
      %p196 = scmp.eq.s32.totalorder %s27, 1
      %p197 = scmp.ne.s32.totalorder %s192, %s194
      %p198 = scmp.eq.s32.totalorder %s27, 0
      %p199 = por %p197, %p198
      %p200 = scmp.ne.s32.totalorder %s192, %s194
      %p201 = scmp.eq.s32.totalorder %s32, 1
      %p202 = por %p200, %p201
      %p203 = scmp.ne.s32.totalorder %s194, %s195
      %p204 = scmp.eq.s32.totalorder %s32, 0
      %p205 = por %p203, %p204
      %p206 = scmp.ne.s32.totalorder %s194, %s195
      %p207 = scmp.eq.s32.totalorder %s33, 1
      %p208 = por %p206, %p207
      %p210 = scmp.ne.s32.totalorder %s195, %s209
      %p211 = scmp.eq.s32.totalorder %s33, 0
      %p212 = por %p210, %p211
      %s214 = sadd.s32 %s213, 1
      %p217 = scmp.eq.s32.totalorder %s27, 1
      %p218 = scmp.ne.s32.totalorder %s213, %s215
      %p219 = scmp.eq.s32.totalorder %s27, 0
      %p220 = por %p218, %p219
      %p221 = scmp.ne.s32.totalorder %s213, %s215
      %p222 = scmp.eq.s32.totalorder %s32, 1
      %p223 = por %p221, %p222
      %p224 = scmp.ne.s32.totalorder %s215, %s216
      %p225 = scmp.eq.s32.totalorder %s32, 0
      %p226 = por %p224, %p225
      %p227 = scmp.ne.s32.totalorder %s215, %s216
      %p228 = scmp.eq.s32.totalorder %s33, 1
      %p229 = por %p227, %p228
      %p231 = scmp.ne.s32.totalorder %s216, %s230
      %p232 = scmp.eq.s32.totalorder %s33, 0
      %p233 = por %p231, %p232
      %s235 = sadd.s32 %s234, 1
      %p238 = scmp.eq.s32.totalorder %s27, 1
      %p239 = scmp.ne.s32.totalorder %s234, %s236
      %p240 = scmp.eq.s32.totalorder %s27, 0
      %p241 = por %p239, %p240
      %p242 = scmp.ne.s32.totalorder %s234, %s236
      %p243 = scmp.eq.s32.totalorder %s32, 1
      %p244 = por %p242, %p243
      %p245 = scmp.ne.s32.totalorder %s236, %s237
      %p246 = scmp.eq.s32.totalorder %s32, 0
      %p247 = por %p245, %p246
      %p248 = scmp.ne.s32.totalorder %s236, %s237
      %p249 = scmp.eq.s32.totalorder %s33, 1
      %p250 = por %p248, %p249
      %p252 = scmp.ne.s32.totalorder %s237, %s251
      %p253 = scmp.eq.s32.totalorder %s33, 0
      %p254 = por %p252, %p253
      %s255 = ssub.s32 %s27, %s34
      %p256 = scmp.eq.s32.totalorder %s255, 0
      %s258 = sadd.s32 %s257, 1
      %s259 = scalar_select %p256, %s257, %s258
      %p262 = pneg %p256
      %p263 = scmp.eq.s32.totalorder %s27, 1
      %p264 = por %p262, %p263
      %p265 = scmp.ne.s32.totalorder %s257, %s260
      %p266 = scmp.eq.s32.totalorder %s27, 0
      %p267 = por %p265, %p266
      %p268 = scmp.ne.s32.totalorder %s257, %s260
      %p269 = scmp.eq.s32.totalorder %s32, 1
      %p270 = por %p268, %p269
      %p271 = scmp.ne.s32.totalorder %s260, %s261
      %p272 = scmp.eq.s32.totalorder %s32, 0
      %p273 = por %p271, %p272
      %p274 = scmp.ne.s32.totalorder %s260, %s261
      %p275 = scmp.eq.s32.totalorder %s33, 1
      %p276 = por %p274, %p275
      %p278 = scmp.ne.s32.totalorder %s261, %s277
      %p279 = scmp.eq.s32.totalorder %s33, 0
      %p280 = por %p278, %p279
      %p281 = scmp.le.s32.totalorder 1, %s27
      %p282 = scmp.lt.s32.totalorder %s27, 3
      %p283 = pnand %p281, %p282
      %p284 = pneg %p283
      // Predicated region
      $region9: #{tpu_custom_call.1} parent=5 // pred_check
        _
      $region10: #{tpu_custom_call.1} parent=5 // pred_check_branch
        %286 = sbr.rel (%p283) target = $region12
      $region11: #{tpu_custom_call.1} parent=5 // pred_region
        %s287 = ssub.s32 %s27, 1
        // Predicated region
        $region13: #{tpu_custom_call.1} parent=11 // pred_check
          %p288 = pneg %p100
        $region14: #{tpu_custom_call.1} parent=11 // pred_check_branch
          %290 = sbr.rel (%p288) target = $region16
        $region15: #{tpu_custom_call.1} parent=11 // pred_region
          %292 = vsyncadd [#allocation6], 0
          %s293 = sshll.u32 %s2, 4
          %s294 = int_to_ptr.hbm [resolvable:$true] %s293
          %s295 = sshll.u32 [#allocation7], 4
          %s296 = int_to_ptr.vmem [resolvable:$true] %s295
          %301 = dma.hbm_to_vmem [thread:$0]  %s294, 2048, %s296, [#allocation6], 128, 128, 8
        $region16: #{tpu_custom_call.1} parent=11 // pred_fallthru
          _
        // Predicated region
        $region17: #{tpu_custom_call.1} parent=11 // pred_check
          %p302 = pneg %p121
        $region18: #{tpu_custom_call.1} parent=11 // pred_check_branch
          %304 = sbr.rel (%p302) target = $region20
        $region19: #{tpu_custom_call.1} parent=11 // pred_region
          _
        $region20: #{tpu_custom_call.1} parent=11 // pred_fallthru
          _
        // Predicated region
        $region21: #{tpu_custom_call.1} parent=11 // pred_check
          %p305 = pneg %p142
        $region22: #{tpu_custom_call.1} parent=11 // pred_check_branch
          %307 = sbr.rel (%p305) target = $region24
        $region23: #{tpu_custom_call.1} parent=11 // pred_region
          %309 = vsyncadd [#allocation9], 0
          %s310 = sshll.u32 %s4, 4
          %s311 = int_to_ptr.hbm [resolvable:$true] %s310
          %s312 = sshll.u32 [#allocation8], 4
          %s313 = int_to_ptr.vmem [resolvable:$true] %s312
          %318 = dma.hbm_to_vmem [thread:$0]  %s311, 2048, %s313, [#allocation9], 128, 128, 8
        $region24: #{tpu_custom_call.1} parent=11 // pred_fallthru
          _
        // Predicated region
        $region25: #{tpu_custom_call.1} parent=11 // pred_check
          %p319 = pneg %p163
        $region26: #{tpu_custom_call.1} parent=11 // pred_check_branch
          %321 = sbr.rel (%p319) target = $region28
        $region27: #{tpu_custom_call.1} parent=11 // pred_region
          _
        $region28: #{tpu_custom_call.1} parent=11 // pred_fallthru
          _
        // Predicated region
        $region29: #{tpu_custom_call.1} parent=11 // pred_check
          %p322 = pneg %p184
        $region30: #{tpu_custom_call.1} parent=11 // pred_check_branch
          %324 = sbr.rel (%p322) target = $region32
        $region31: #{tpu_custom_call.1} parent=11 // pred_region
          %326 = vsyncadd [#allocation9], 0
          %s327 = sshll.u32 %s6, 4
          %s328 = int_to_ptr.hbm [resolvable:$true] %s327
          %s329 = sshll.u32 [#allocation10], 4
          %s330 = int_to_ptr.vmem [resolvable:$true] %s329
          %335 = dma.hbm_to_vmem [thread:$0]  %s328, 4096, %s330, [#allocation9], 256, 256, 16
        $region32: #{tpu_custom_call.1} parent=11 // pred_fallthru
          _
        // Predicated region
        $region33: #{tpu_custom_call.1} parent=11 // pred_check
          %p336 = pneg %p205
        $region34: #{tpu_custom_call.1} parent=11 // pred_check_branch
          %338 = sbr.rel (%p336) target = $region36
        $region35: #{tpu_custom_call.1} parent=11 // pred_region
          _
        $region36: #{tpu_custom_call.1} parent=11 // pred_fallthru
          _
        // Predicated region
        $region37: #{tpu_custom_call.1} parent=11 // pred_check
          %p339 = pneg %p226
        $region38: #{tpu_custom_call.1} parent=11 // pred_check_branch
          %341 = sbr.rel (%p339) target = $region40
        $region39: #{tpu_custom_call.1} parent=11 // pred_region
          %343 = vsyncadd [#allocation12], 0
          %s344 = sshll.u32 %s8, 4
          %s345 = int_to_ptr.hbm [resolvable:$true] %s344
          %s346 = sshll.u32 [#allocation11], 4
          %s347 = int_to_ptr.vmem [resolvable:$true] %s346
          %352 = dma.hbm_to_vmem [thread:$0]  %s345, 4096, %s347, [#allocation12], 128, 128, 8
        $region40: #{tpu_custom_call.1} parent=11 // pred_fallthru
          _
        // Predicated region
        $region41: #{tpu_custom_call.1} parent=11 // pred_check
          %p353 = pneg %p247
        $region42: #{tpu_custom_call.1} parent=11 // pred_check_branch
          %355 = sbr.rel (%p353) target = $region44
        $region43: #{tpu_custom_call.1} parent=11 // pred_region
          _
        $region44: #{tpu_custom_call.1} parent=11 // pred_fallthru
          _
      $region12: #{tpu_custom_call.1} parent=5 // pred_fallthru
        _
      %p356 = scmp.lt.s32.totalorder %s27, 2
      // Predicated region
      $region45: #{tpu_custom_call.1} parent=5 // pred_check
        %p357 = pneg %p356
      $region46: #{tpu_custom_call.1} parent=5 // pred_check_branch
        %359 = sbr.rel (%p357) target = $region48
      $region47: #{tpu_custom_call.1} parent=5 // pred_region
        // Predicated region
        $region49: #{tpu_custom_call.1} parent=47 // pred_check
          %p360 = pneg %p47
        $region50: #{tpu_custom_call.1} parent=47 // pred_check_branch
          %362 = sbr.rel (%p360) target = $region52
        $region51: #{tpu_custom_call.1} parent=47 // pred_region
          %s363 = sand.u32 %s37, 1
          %s364 = scalar_lea.sflag [#allocation3], %s363
          %s365 = sand.u32 %s37, 1
          %s366 = smul.addr %s365, 128
          %s367 = scalar_lea.vmem [#allocation2], %s366
          %s368 = smul.u32 8, %s27
          %370 = vsyncadd %s364, 0
          %s371 = smul.addr %s368, 2
          %s372 = smul.addr %s371, 8
          %s373 = scalar_lea.hbm %s0, %s372
          %s374 = sshll.u32 %s373, 4
          %s375 = int_to_ptr.hbm [resolvable:$true] %s374
          %s376 = sshll.u32 %s367, 4
          %s377 = int_to_ptr.vmem [resolvable:$true] %s376
          %382 = dma.hbm_to_vmem [thread:$0]  %s375, 2048, %s377, %s364, 128, 128, 8
        $region52: #{tpu_custom_call.1} parent=47 // pred_fallthru
          _
        // Predicated region
        $region53: #{tpu_custom_call.1} parent=47 // pred_check
          %p383 = pneg %p73
        $region54: #{tpu_custom_call.1} parent=47 // pred_check_branch
          %385 = sbr.rel (%p383) target = $region56
        $region55: #{tpu_custom_call.1} parent=47 // pred_region
          %s386 = sand.u32 %s27, 1
          %s387 = scalar_lea.sflag [#allocation6], %s386
          %s388 = sand.u32 %s63, 1
          %s389 = smul.addr %s388, 8
          %s390 = scalar_lea.vmem [#allocation5], %s389
          %392 = vsyncadd %s387, 0
          %s393 = smul.addr %s27, 8
          %s394 = scalar_lea.hbm %s1, %s393
          %s396 = sshll.u32 %s394, 4
          %s397 = int_to_ptr.hbm [resolvable:$true] %s396
          %s398 = sshll.u32 %s390, 4
          %s399 = int_to_ptr.vmem [resolvable:$true] %s398
          %401 = dma.hbm_to_vmem [thread:$0]  %s397, 128, %s399, %s387
        $region56: #{tpu_custom_call.1} parent=47 // pred_fallthru
          _
      $region48: #{tpu_custom_call.1} parent=5 // pred_fallthru
        _
      %p402 = scmp.le.s32.totalorder 1, %s27
      %p403 = scmp.lt.s32.totalorder %s27, 3
      %p404 = pnand %p402, %p403
      %p405 = pneg %p404
      // Predicated region
      $region57: #{tpu_custom_call.1} parent=5 // pred_check
        _
      $region58: #{tpu_custom_call.1} parent=5 // pred_check_branch
        %407 = sbr.rel (%p404) target = $region60
      $region59: #{tpu_custom_call.1} parent=5 // pred_region
        %s408 = ssub.s32 %s27, 1
        %s409 = sand.u32 %s40, 1
        %s410 = scalar_lea.sflag [#allocation3], %s409
        %s411 = sand.u32 %s40, 1
        %s412 = smul.addr %s411, 128
        %s413 = scalar_lea.vmem [#allocation2], %s412
        // Predicated region
        $region61: #{tpu_custom_call.1} parent=59 // pred_check
          %p414 = pneg %p53
        $region62: #{tpu_custom_call.1} parent=59 // pred_check_branch
          %416 = sbr.rel (%p414) target = $region64
        $region63: #{tpu_custom_call.1} parent=59 // pred_region
          %418 = dma.done %s410, 2048
        $region64: #{tpu_custom_call.1} parent=59 // pred_fallthru
          _
        %s419 = sand.u32 %s32, 1
        %s420 = scalar_lea.sflag [#allocation6], %s419
        %s421 = sand.u32 %s66, 1
        %s422 = smul.addr %s421, 8
        %s423 = scalar_lea.vmem [#allocation5], %s422
        // Predicated region
        $region65: #{tpu_custom_call.1} parent=59 // pred_check
          %p424 = pneg %p79
        $region66: #{tpu_custom_call.1} parent=59 // pred_check_branch
          %426 = sbr.rel (%p424) target = $region68
        $region67: #{tpu_custom_call.1} parent=59 // pred_region
          %428 = dma.done %s420, 128
        $region68: #{tpu_custom_call.1} parent=59 // pred_fallthru
          _
        // Predicated region
        $region69: #{tpu_custom_call.1} parent=59 // pred_check
          %p429 = pneg %p100
        $region70: #{tpu_custom_call.1} parent=59 // pred_check_branch
          %431 = sbr.rel (%p429) target = $region72
        $region71: #{tpu_custom_call.1} parent=59 // pred_region
          %433 = dma.done [#allocation6], 2048
        $region72: #{tpu_custom_call.1} parent=59 // pred_fallthru
          _
        // Predicated region
        $region73: #{tpu_custom_call.1} parent=59 // pred_check
          %p434 = pneg %p142
        $region74: #{tpu_custom_call.1} parent=59 // pred_check_branch
          %436 = sbr.rel (%p434) target = $region76
        $region75: #{tpu_custom_call.1} parent=59 // pred_region
          %438 = dma.done [#allocation9], 2048
        $region76: #{tpu_custom_call.1} parent=59 // pred_fallthru
          _
        // Predicated region
        $region77: #{tpu_custom_call.1} parent=59 // pred_check
          %p439 = pneg %p184
        $region78: #{tpu_custom_call.1} parent=59 // pred_check_branch
          %441 = sbr.rel (%p439) target = $region80
        $region79: #{tpu_custom_call.1} parent=59 // pred_region
          %443 = dma.done [#allocation9], 4096
        $region80: #{tpu_custom_call.1} parent=59 // pred_fallthru
          _
        // Predicated region
        $region81: #{tpu_custom_call.1} parent=59 // pred_check
          %p444 = pneg %p226
        $region82: #{tpu_custom_call.1} parent=59 // pred_check_branch
          %446 = sbr.rel (%p444) target = $region84
        $region83: #{tpu_custom_call.1} parent=59 // pred_region
          %448 = dma.done [#allocation12], 4096
        $region84: #{tpu_custom_call.1} parent=59 // pred_fallthru
          _
        %s449 = sand.u32 %s40, 1
        %s450 = scalar_lea.sflag [#allocation3], %s449
        %s451 = sand.u32 %s40, 1
        %s452 = smul.addr %s451, 128
        %s453 = scalar_lea.vmem [#allocation2], %s452
        %p454 = pneg %p53
        %p455 = pneg %p50
        %s456 = sand.u32 %s32, 1
        %s457 = scalar_lea.sflag [#allocation6], %s456
        %s458 = sand.u32 %s66, 1
        %s459 = smul.addr %s458, 8
        %s460 = scalar_lea.vmem [#allocation5], %s459
        %p461 = pneg %p79
        %p462 = pneg %p76
        %p463 = pneg %p100
        %p464 = pneg %p97
        %p465 = pneg %p121
        %p466 = pneg %p118
        %p467 = pneg %p142
        %p468 = pneg %p139
        %p469 = pneg %p163
        %p470 = pneg %p160
        %p471 = pneg %p184
        %p472 = pneg %p181
        %p473 = pneg %p205
        %p474 = pneg %p202
        %p475 = pneg %p226
        %p476 = pneg %p223
        %p477 = pneg %p247
        %p478 = pneg %p244
        %p479 = pneg %p273
        %p480 = pneg %p270
        %s481 = sand.u32 %s260, 1
        %s482 = scalar_lea.sflag [#allocation4], %s481
        %s483 = sand.u32 %s260, 1
        %s484 = smul.addr %s483, 128
        %s485 = scalar_lea.vmem [#allocation13], %s484
        %s486 = smul.u32 8, %s32
        %s487 = smul.u32 8, %s32
        %v488 = vld [vmem:[%s413] sm:$0xff]
        %v489 = vld [vmem:[%s413 + $0x8] sm:$0xff]
        %v490 = vld [vmem:[%s413 + $0x10] sm:$0xff]
        %v491 = vld [vmem:[%s413 + $0x18] sm:$0xff]
        %v492 = vld [vmem:[%s413 + $0x20] sm:$0xff]
        %v493 = vld [vmem:[%s413 + $0x28] sm:$0xff]
        %v494 = vld [vmem:[%s413 + $0x30] sm:$0xff]
        %v495 = vld [vmem:[%s413 + $0x38] sm:$0xff]
        %v496 = vld [vmem:[%s413 + $0x40] sm:$0xff]
        %v497 = vld [vmem:[%s413 + $0x48] sm:$0xff]
        %v498 = vld [vmem:[%s413 + $0x50] sm:$0xff]
        %v499 = vld [vmem:[%s413 + $0x58] sm:$0xff]
        %v500 = vld [vmem:[%s413 + $0x60] sm:$0xff]
        %v501 = vld [vmem:[%s413 + $0x68] sm:$0xff]
        %v502 = vld [vmem:[%s413 + $0x70] sm:$0xff]
        %v503 = vld [vmem:[%s413 + $0x78] sm:$0xff]
        %v504 = vld [vmem:[%s423] sm:$0xff]
        %v505 = vld [vmem:[#allocation7] sm:$0xff]
        %v506 = vld [vmem:[#allocation7 + $0x8] sm:$0xff]
        %v507 = vld [vmem:[#allocation7 + $0x10] sm:$0xff]
        %v508 = vld [vmem:[#allocation7 + $0x18] sm:$0xff]
        %v509 = vld [vmem:[#allocation7 + $0x20] sm:$0xff]
        %v510 = vld [vmem:[#allocation7 + $0x28] sm:$0xff]
        %v511 = vld [vmem:[#allocation7 + $0x30] sm:$0xff]
        %v512 = vld [vmem:[#allocation7 + $0x38] sm:$0xff]
        %v513 = vld [vmem:[#allocation7 + $0x40] sm:$0xff]
        %v514 = vld [vmem:[#allocation7 + $0x48] sm:$0xff]
        %v515 = vld [vmem:[#allocation7 + $0x50] sm:$0xff]
        %v516 = vld [vmem:[#allocation7 + $0x58] sm:$0xff]
        %v517 = vld [vmem:[#allocation7 + $0x60] sm:$0xff]
        %v518 = vld [vmem:[#allocation7 + $0x68] sm:$0xff]
        %v519 = vld [vmem:[#allocation7 + $0x70] sm:$0xff]
        %v520 = vld [vmem:[#allocation7 + $0x78] sm:$0xff]
        %v521 = vld [vmem:[%s3] sm:$0x1]
        %v523 = vperm.slane %v521, 0
        %525 = vmatpush.msra.mxu0 %v520
        %526 = vmatpush.msra.mxu0 %v519
        %527 = vmatpush.msra.mxu0 %v518
        %528 = vmatpush.msra.mxu0 %v517
        %529 = vmatpush.msra.mxu0 %v516
        %530 = vmatpush.msra.mxu0 %v515
        %531 = vmatpush.msra.mxu0 %v514
        %532 = vmatpush.msra.mxu0 %v513
        %533 = vmatpush.msra.mxu0 %v512
        %534 = vmatpush.msra.mxu0 %v511
        %535 = vmatpush.msra.mxu0 %v510
        %536 = vmatpush.msra.mxu0 %v509
        %537 = vmatpush.msra.mxu0 %v508
        %538 = vmatpush.msra.mxu0 %v507
        %539 = vmatpush.msra.mxu0 %v506
        %540 = vmatpush.msra.mxu0 %v505
        %541 = vmatmul.f32.gmra.mxu0 %v504
        %v542 = vpop.f32.mrf.mxu0
        %v543 = vadd.f32 %v523, %v542
        %544 = vdwg.mxu0
        %v545 = vmax.f32 %v543, 0.0
        %v546 = vld [vmem:[#allocation8] sm:$0xff]
        %v547 = vld [vmem:[#allocation8 + $0x8] sm:$0xff]
        %v548 = vld [vmem:[#allocation8 + $0x10] sm:$0xff]
        %v549 = vld [vmem:[#allocation8 + $0x18] sm:$0xff]
        %v550 = vld [vmem:[#allocation8 + $0x20] sm:$0xff]
        %v551 = vld [vmem:[#allocation8 + $0x28] sm:$0xff]
        %v552 = vld [vmem:[#allocation8 + $0x30] sm:$0xff]
        %v553 = vld [vmem:[#allocation8 + $0x38] sm:$0xff]
        %v554 = vld [vmem:[#allocation8 + $0x40] sm:$0xff]
        %v555 = vld [vmem:[#allocation8 + $0x48] sm:$0xff]
        %v556 = vld [vmem:[#allocation8 + $0x50] sm:$0xff]
        %v557 = vld [vmem:[#allocation8 + $0x58] sm:$0xff]
        %v558 = vld [vmem:[#allocation8 + $0x60] sm:$0xff]
        %v559 = vld [vmem:[#allocation8 + $0x68] sm:$0xff]
        %v560 = vld [vmem:[#allocation8 + $0x70] sm:$0xff]
        %v561 = vld [vmem:[#allocation8 + $0x78] sm:$0xff]
        %v562 = vld [vmem:[%s5] sm:$0x1]
        %v564 = vperm.slane %v562, 0
        %566 = vmatpush.msra.mxu0 %v561
        %567 = vmatpush.msra.mxu0 %v560
        %568 = vmatpush.msra.mxu0 %v559
        %569 = vmatpush.msra.mxu0 %v558
        %570 = vmatpush.msra.mxu0 %v557
        %571 = vmatpush.msra.mxu0 %v556
        %572 = vmatpush.msra.mxu0 %v555
        %573 = vmatpush.msra.mxu0 %v554
        %574 = vmatpush.msra.mxu0 %v553
        %575 = vmatpush.msra.mxu0 %v552
        %576 = vmatpush.msra.mxu0 %v551
        %577 = vmatpush.msra.mxu0 %v550
        %578 = vmatpush.msra.mxu0 %v549
        %579 = vmatpush.msra.mxu0 %v548
        %580 = vmatpush.msra.mxu0 %v547
        %581 = vmatpush.msra.mxu0 %v546
        %582 = vmatmul.f32.gmra.mxu0 %v488
        %v583 = vpop.f32.mrf.mxu0
        %v584 = vadd.f32 %v564, %v583
        %585 = vmatmul.f32.gmra.mxu0 %v489
        %v586 = vpop.f32.mrf.mxu0
        %v587 = vadd.f32 %v564, %v586
        %588 = vmatmul.f32.gmra.mxu0 %v490
        %v589 = vpop.f32.mrf.mxu0
        %v590 = vadd.f32 %v564, %v589
        %591 = vmatmul.f32.gmra.mxu0 %v491
        %v592 = vpop.f32.mrf.mxu0
        %v593 = vadd.f32 %v564, %v592
        %594 = vmatmul.f32.gmra.mxu0 %v492
        %v595 = vpop.f32.mrf.mxu0
        %v596 = vadd.f32 %v564, %v595
        %597 = vmatmul.f32.gmra.mxu0 %v493
        %v598 = vpop.f32.mrf.mxu0
        %v599 = vadd.f32 %v564, %v598
        %600 = vmatmul.f32.gmra.mxu0 %v494
        %v601 = vpop.f32.mrf.mxu0
        %v602 = vadd.f32 %v564, %v601
        %603 = vmatmul.f32.gmra.mxu0 %v495
        %v604 = vpop.f32.mrf.mxu0
        %v605 = vadd.f32 %v564, %v604
        %606 = vmatmul.f32.gmra.mxu0 %v496
        %v607 = vpop.f32.mrf.mxu0
        %v608 = vadd.f32 %v564, %v607
        %609 = vmatmul.f32.gmra.mxu0 %v497
        %v610 = vpop.f32.mrf.mxu0
        %v611 = vadd.f32 %v564, %v610
        %612 = vmatmul.f32.gmra.mxu0 %v498
        %v613 = vpop.f32.mrf.mxu0
        %v614 = vadd.f32 %v564, %v613
        %615 = vmatmul.f32.gmra.mxu0 %v499
        %v616 = vpop.f32.mrf.mxu0
        %v617 = vadd.f32 %v564, %v616
        %618 = vmatmul.f32.gmra.mxu0 %v500
        %v619 = vpop.f32.mrf.mxu0
        %v620 = vadd.f32 %v564, %v619
        %621 = vmatmul.f32.gmra.mxu0 %v501
        %v622 = vpop.f32.mrf.mxu0
        %v623 = vadd.f32 %v564, %v622
        %624 = vmatmul.f32.gmra.mxu0 %v502
        %v625 = vpop.f32.mrf.mxu0
        %v626 = vadd.f32 %v564, %v625
        %627 = vmatmul.f32.gmra.mxu0 %v503
        %v628 = vpop.f32.mrf.mxu0
        %v629 = vadd.f32 %v564, %v628
        %630 = vdwg.mxu0
        %v631 = vmax.f32 %v584, 0.0
        %v632 = vmax.f32 %v587, 0.0
        %v633 = vmax.f32 %v590, 0.0
        %v634 = vmax.f32 %v593, 0.0
        %v635 = vmax.f32 %v596, 0.0
        %v636 = vmax.f32 %v599, 0.0
        %v637 = vmax.f32 %v602, 0.0
        %v638 = vmax.f32 %v605, 0.0
        %v639 = vmax.f32 %v608, 0.0
        %v640 = vmax.f32 %v611, 0.0
        %v641 = vmax.f32 %v614, 0.0
        %v642 = vmax.f32 %v617, 0.0
        %v643 = vmax.f32 %v620, 0.0
        %v644 = vmax.f32 %v623, 0.0
        %v645 = vmax.f32 %v626, 0.0
        %v646 = vmax.f32 %v629, 0.0
        %v648 = vrot.slane %v545, 1
        %v649 = vrot.slane %v545, 2
        %v650 = vrot.slane %v545, 3
        %v651 = vrot.slane %v545, 4
        %v652 = vrot.slane %v545, 5
        %v653 = vrot.slane %v545, 6
        %v654 = vrot.slane %v545, 7
        %v655 = vperm.slane %v545, 0
        %v656 = vperm.slane %v648, 0
        %v657 = vperm.slane %v649, 0
        %v658 = vperm.slane %v650, 0
        %v659 = vperm.slane %v651, 0
        %v660 = vperm.slane %v652, 0
        %v661 = vperm.slane %v653, 0
        %v662 = vperm.slane %v654, 0
        %v671 = vmul.f32 %v655, %v631
        %v672 = vmul.f32 %v655, %v632
        %v673 = vmul.f32 %v656, %v633
        %v674 = vmul.f32 %v656, %v634
        %v675 = vmul.f32 %v657, %v635
        %v676 = vmul.f32 %v657, %v636
        %v677 = vmul.f32 %v658, %v637
        %v678 = vmul.f32 %v658, %v638
        %v679 = vmul.f32 %v659, %v639
        %v680 = vmul.f32 %v659, %v640
        %v681 = vmul.f32 %v660, %v641
        %v682 = vmul.f32 %v660, %v642
        %v683 = vmul.f32 %v661, %v643
        %v684 = vmul.f32 %v661, %v644
        %v685 = vmul.f32 %v662, %v645
        %v686 = vmul.f32 %v662, %v646
        %v687 = vadd.f32 %v671, %v672
        %v688 = vrot.slane %v687, 4
        %v689 = vadd.f32 %v687, %v688
        %v690 = vrot.slane %v689, 2
        %v691 = vadd.f32 %v689, %v690
        %v692 = vrot.slane %v691, 1
        %v693 = vadd.f32 %v691, %v692
        %v694 = vadd.f32 %v673, %v674
        %v695 = vrot.slane %v694, 4
        %v696 = vadd.f32 %v694, %v695
        %v697 = vrot.slane %v696, 2
        %v698 = vadd.f32 %v696, %v697
        %v699 = vrot.slane %v698, 1
        %v700 = vadd.f32 %v698, %v699
        %v701 = vadd.f32 %v675, %v676
        %v702 = vrot.slane %v701, 4
        %v703 = vadd.f32 %v701, %v702
        %v704 = vrot.slane %v703, 2
        %v705 = vadd.f32 %v703, %v704
        %v706 = vrot.slane %v705, 1
        %v707 = vadd.f32 %v705, %v706
        %v708 = vadd.f32 %v677, %v678
        %v709 = vrot.slane %v708, 4
        %v710 = vadd.f32 %v708, %v709
        %v711 = vrot.slane %v710, 2
        %v712 = vadd.f32 %v710, %v711
        %v713 = vrot.slane %v712, 1
        %v714 = vadd.f32 %v712, %v713
        %v715 = vadd.f32 %v679, %v680
        %v716 = vrot.slane %v715, 4
        %v717 = vadd.f32 %v715, %v716
        %v718 = vrot.slane %v717, 2
        %v719 = vadd.f32 %v717, %v718
        %v720 = vrot.slane %v719, 1
        %v721 = vadd.f32 %v719, %v720
        %v722 = vadd.f32 %v681, %v682
        %v723 = vrot.slane %v722, 4
        %v724 = vadd.f32 %v722, %v723
        %v725 = vrot.slane %v724, 2
        %v726 = vadd.f32 %v724, %v725
        %v727 = vrot.slane %v726, 1
        %v728 = vadd.f32 %v726, %v727
        %v729 = vadd.f32 %v683, %v684
        %v730 = vrot.slane %v729, 4
        %v731 = vadd.f32 %v729, %v730
        %v732 = vrot.slane %v731, 2
        %v733 = vadd.f32 %v731, %v732
        %v734 = vrot.slane %v733, 1
        %v735 = vadd.f32 %v733, %v734
        %v736 = vadd.f32 %v685, %v686
        %v737 = vrot.slane %v736, 4
        %v738 = vadd.f32 %v736, %v737
        %v739 = vrot.slane %v738, 2
        %v740 = vadd.f32 %v738, %v739
        %v741 = vrot.slane %v740, 1
        %v742 = vadd.f32 %v740, %v741
        %v743 = vrcp.pop 16.0
        %v744 = vmul.f32 16.0, %v743
        %v745 = vsub.f32 1.0, %v744
        %v746 = vmul.f32 %v743, %v745
        %v747 = vadd.f32 %v743, %v746
        %vm748 = vweird.f32 %v743
        %v749 = vsel %vm748, %v743, %v747
        %v750 = vmul.f32 %v693, %v749
        %v751 = vmul.f32 %v700, %v749
        %v752 = vmul.f32 %v707, %v749
        %v753 = vmul.f32 %v714, %v749
        %v754 = vmul.f32 %v721, %v749
        %v755 = vmul.f32 %v728, %v749
        %v756 = vmul.f32 %v735, %v749
        %v757 = vmul.f32 %v742, %v749
        %v758 = vld [vmem:[#allocation10] sm:$0xff]
        %v759 = vld [vmem:[#allocation10 + $0x8] sm:$0xff]
        %v760 = vld [vmem:[#allocation10 + $0x10] sm:$0xff]
        %v761 = vld [vmem:[#allocation10 + $0x18] sm:$0xff]
        %v762 = vld [vmem:[#allocation10 + $0x20] sm:$0xff]
        %v763 = vld [vmem:[#allocation10 + $0x28] sm:$0xff]
        %v764 = vld [vmem:[#allocation10 + $0x30] sm:$0xff]
        %v765 = vld [vmem:[#allocation10 + $0x38] sm:$0xff]
        %v766 = vld [vmem:[#allocation10 + $0x40] sm:$0xff]
        %v767 = vld [vmem:[#allocation10 + $0x48] sm:$0xff]
        %v768 = vld [vmem:[#allocation10 + $0x50] sm:$0xff]
        %v769 = vld [vmem:[#allocation10 + $0x58] sm:$0xff]
        %v770 = vld [vmem:[#allocation10 + $0x60] sm:$0xff]
        %v771 = vld [vmem:[#allocation10 + $0x68] sm:$0xff]
        %v772 = vld [vmem:[#allocation10 + $0x70] sm:$0xff]
        %v773 = vld [vmem:[#allocation10 + $0x78] sm:$0xff]
        %v774 = vld [vmem:[#allocation10 + $0x80] sm:$0xff]
        %v775 = vld [vmem:[#allocation10 + $0x88] sm:$0xff]
        %v776 = vld [vmem:[#allocation10 + $0x90] sm:$0xff]
        %v777 = vld [vmem:[#allocation10 + $0x98] sm:$0xff]
        %v778 = vld [vmem:[#allocation10 + $0xa0] sm:$0xff]
        %v779 = vld [vmem:[#allocation10 + $0xa8] sm:$0xff]
        %v780 = vld [vmem:[#allocation10 + $0xb0] sm:$0xff]
        %v781 = vld [vmem:[#allocation10 + $0xb8] sm:$0xff]
        %v782 = vld [vmem:[#allocation10 + $0xc0] sm:$0xff]
        %v783 = vld [vmem:[#allocation10 + $0xc8] sm:$0xff]
        %v784 = vld [vmem:[#allocation10 + $0xd0] sm:$0xff]
        %v785 = vld [vmem:[#allocation10 + $0xd8] sm:$0xff]
        %v786 = vld [vmem:[#allocation10 + $0xe0] sm:$0xff]
        %v787 = vld [vmem:[#allocation10 + $0xe8] sm:$0xff]
        %v788 = vld [vmem:[#allocation10 + $0xf0] sm:$0xff]
        %v789 = vld [vmem:[#allocation10 + $0xf8] sm:$0xff]
        %v790 = vld [vmem:[%s7] sm:$0x3]
        %v792 = vperm.slane %v790, 0
        %v793 = vperm.slane %v790, 1
        %vm804 = vcmask 1041409
        %v805 = vsel %vm804, %v751, %v750
        %vm806 = vcmask 1042434
        %v807 = vsel %vm806, %v752, %v805
        %vm808 = vcmask 1043459
        %v809 = vsel %vm808, %v753, %v807
        %vm810 = vcmask 1044484
        %v811 = vsel %vm810, %v754, %v809
        %vm812 = vcmask 1045509
        %v813 = vsel %vm812, %v755, %v811
        %vm814 = vcmask 1046534
        %v815 = vsel %vm814, %v756, %v813
        %vm816 = vcmask 1047559
        %v817 = vsel %vm816, %v757, %v815
        %819 = vmatpush.msra.mxu0 %v788
        %820 = vmatpush.msra.mxu0 %v786
        %821 = vmatpush.msra.mxu0 %v784
        %822 = vmatpush.msra.mxu0 %v782
        %823 = vmatpush.msra.mxu0 %v780
        %824 = vmatpush.msra.mxu0 %v778
        %825 = vmatpush.msra.mxu0 %v776
        %826 = vmatpush.msra.mxu0 %v774
        %827 = vmatpush.msra.mxu0 %v772
        %828 = vmatpush.msra.mxu0 %v770
        %829 = vmatpush.msra.mxu0 %v768
        %830 = vmatpush.msra.mxu0 %v766
        %831 = vmatpush.msra.mxu0 %v764
        %832 = vmatpush.msra.mxu0 %v762
        %833 = vmatpush.msra.mxu0 %v760
        %834 = vmatpush.msra.mxu0 %v758
        %835 = vmatmul.f32.gmra.mxu0 %v817
        %v836 = vpop.f32.mrf.mxu0
        %v837 = vadd.f32 %v792, %v836
        %838 = vdwg.mxu0
        %839 = vmatpush.msra.mxu0 %v789
        %840 = vmatpush.msra.mxu0 %v787
        %841 = vmatpush.msra.mxu0 %v785
        %842 = vmatpush.msra.mxu0 %v783
        %843 = vmatpush.msra.mxu0 %v781
        %844 = vmatpush.msra.mxu0 %v779
        %845 = vmatpush.msra.mxu0 %v777
        %846 = vmatpush.msra.mxu0 %v775
        %847 = vmatpush.msra.mxu0 %v773
        %848 = vmatpush.msra.mxu0 %v771
        %849 = vmatpush.msra.mxu0 %v769
        %850 = vmatpush.msra.mxu0 %v767
        %851 = vmatpush.msra.mxu0 %v765
        %852 = vmatpush.msra.mxu0 %v763
        %853 = vmatpush.msra.mxu0 %v761
        %854 = vmatpush.msra.mxu0 %v759
        %855 = vmatmul.f32.gmra.mxu0 %v817
        %v856 = vpop.f32.mrf.mxu0
        %v857 = vadd.f32 %v793, %v856
        %858 = vdwg.mxu0
        %v859 = vmax.f32 %v837, 0.0
        %v860 = vmax.f32 %v857, 0.0
        %v861 = vld [vmem:[#allocation11] sm:$0xff]
        %v862 = vld [vmem:[#allocation11 + $0x8] sm:$0xff]
        %v863 = vld [vmem:[#allocation11 + $0x10] sm:$0xff]
        %v864 = vld [vmem:[#allocation11 + $0x18] sm:$0xff]
        %v865 = vld [vmem:[#allocation11 + $0x20] sm:$0xff]
        %v866 = vld [vmem:[#allocation11 + $0x28] sm:$0xff]
        %v867 = vld [vmem:[#allocation11 + $0x30] sm:$0xff]
        %v868 = vld [vmem:[#allocation11 + $0x38] sm:$0xff]
        %v869 = vld [vmem:[#allocation11 + $0x40] sm:$0xff]
        %v870 = vld [vmem:[#allocation11 + $0x48] sm:$0xff]
        %v871 = vld [vmem:[#allocation11 + $0x50] sm:$0xff]
        %v872 = vld [vmem:[#allocation11 + $0x58] sm:$0xff]
        %v873 = vld [vmem:[#allocation11 + $0x60] sm:$0xff]
        %v874 = vld [vmem:[#allocation11 + $0x68] sm:$0xff]
        %v875 = vld [vmem:[#allocation11 + $0x70] sm:$0xff]
        %v876 = vld [vmem:[#allocation11 + $0x78] sm:$0xff]
        %v877 = vld [vmem:[#allocation11 + $0x80] sm:$0xff]
        %v878 = vld [vmem:[#allocation11 + $0x88] sm:$0xff]
        %v879 = vld [vmem:[#allocation11 + $0x90] sm:$0xff]
        %v880 = vld [vmem:[#allocation11 + $0x98] sm:$0xff]
        %v881 = vld [vmem:[#allocation11 + $0xa0] sm:$0xff]
        %v882 = vld [vmem:[#allocation11 + $0xa8] sm:$0xff]
        %v883 = vld [vmem:[#allocation11 + $0xb0] sm:$0xff]
        %v884 = vld [vmem:[#allocation11 + $0xb8] sm:$0xff]
        %v885 = vld [vmem:[#allocation11 + $0xc0] sm:$0xff]
        %v886 = vld [vmem:[#allocation11 + $0xc8] sm:$0xff]
        %v887 = vld [vmem:[#allocation11 + $0xd0] sm:$0xff]
        %v888 = vld [vmem:[#allocation11 + $0xd8] sm:$0xff]
        %v889 = vld [vmem:[#allocation11 + $0xe0] sm:$0xff]
        %v890 = vld [vmem:[#allocation11 + $0xe8] sm:$0xff]
        %v891 = vld [vmem:[#allocation11 + $0xf0] sm:$0xff]
        %v892 = vld [vmem:[#allocation11 + $0xf8] sm:$0xff]
        %v893 = vld [vmem:[%s9] sm:$0x1]
        %v895 = vperm.slane %v893, 0
        %897 = vmatpush.msra.mxu0 %v876
        %898 = vmatpush.msra.mxu0 %v875
        %899 = vmatpush.msra.mxu0 %v874
        %900 = vmatpush.msra.mxu0 %v873
        %901 = vmatpush.msra.mxu0 %v872
        %902 = vmatpush.msra.mxu0 %v871
        %903 = vmatpush.msra.mxu0 %v870
        %904 = vmatpush.msra.mxu0 %v869
        %905 = vmatpush.msra.mxu0 %v868
        %906 = vmatpush.msra.mxu0 %v867
        %907 = vmatpush.msra.mxu0 %v866
        %908 = vmatpush.msra.mxu0 %v865
        %909 = vmatpush.msra.mxu0 %v864
        %910 = vmatpush.msra.mxu0 %v863
        %911 = vmatpush.msra.mxu0 %v862
        %912 = vmatpush.msra.mxu0 %v861
        %913 = vmatmul.f32.gmra.mxu0 %v859
        %v914 = vpop.f32.mrf.mxu0
        %v915 = vadd.f32 %v895, %v914
        %916 = vdwg.mxu0
        %917 = vmatpush.msra.mxu0 %v892
        %918 = vmatpush.msra.mxu0 %v891
        %919 = vmatpush.msra.mxu0 %v890
        %920 = vmatpush.msra.mxu0 %v889
        %921 = vmatpush.msra.mxu0 %v888
        %922 = vmatpush.msra.mxu0 %v887
        %923 = vmatpush.msra.mxu0 %v886
        %924 = vmatpush.msra.mxu0 %v885
        %925 = vmatpush.msra.mxu0 %v884
        %926 = vmatpush.msra.mxu0 %v883
        %927 = vmatpush.msra.mxu0 %v882
        %928 = vmatpush.msra.mxu0 %v881
        %929 = vmatpush.msra.mxu0 %v880
        %930 = vmatpush.msra.mxu0 %v879
        %931 = vmatpush.msra.mxu0 %v878
        %932 = vmatpush.msra.mxu0 %v877
        %933 = vmatmul.f32.gmra.mxu0 %v860
        %v934 = vpop.f32.mrf.mxu0
        %v935 = vadd.f32 %v915, %v934
        %936 = vdwg.mxu0
        %v937 = vxor.u32 %v935, 2147483648
        %v938 = vmul.f32 %v937, 1.442695
        %v939 = vpow.pop %v938
        %v940 = vadd.f32 %v939, 1.0
        %v941 = vrcp.pop %v940
        %v942 = vmul.f32 %v940, %v941
        %v943 = vsub.f32 1.0, %v942
        %v944 = vmul.f32 %v941, %v943
        %v945 = vadd.f32 %v941, %v944
        %vm946 = vweird.f32 %v940
        %vm947 = vweird.f32 %v941
        %vm948 = vmor %vm946, %vm947
        %v949 = vsel %vm948, %v941, %v945
        %v950 = vand.u32 2147483647, %v940
        %vm951 = vcmp.eq.f32.partialorder %v950, 8.507059e+37
        %v952 = vand.u32 %v940, 2147483648
        %v953 = vor.u32 1.1754944e-38, %v952
        %v954 = vsel %vm951, %v953, %v949
        %v955 = vmul.f32 1.0, %v954
        %v957 = vrot.slane %v955, 1
        %v958 = vrot.slane %v955, 2
        %v959 = vrot.slane %v955, 3
        %v960 = vrot.slane %v955, 4
        %v961 = vrot.slane %v955, 5
        %v962 = vrot.slane %v955, 6
        %v963 = vrot.slane %v955, 7
        %v971 = vadd.f32 %v955, 1.0
        %v972 = vadd.f32 %v957, 1.0
        %v973 = vadd.f32 %v958, 1.0
        %v974 = vadd.f32 %v959, 1.0
        %v975 = vadd.f32 %v960, 1.0
        %v976 = vadd.f32 %v961, 1.0
        %v977 = vadd.f32 %v962, 1.0
        %v978 = vadd.f32 %v963, 1.0
        %v987 = vperm.slane %v971, 0
        %v988 = vperm.slane %v972, 0
        %v989 = vperm.slane %v973, 0
        %v990 = vperm.slane %v974, 0
        %v991 = vperm.slane %v975, 0
        %v992 = vperm.slane %v976, 0
        %v993 = vperm.slane %v977, 0
        %v994 = vperm.slane %v978, 0
        %v1003 = vmul.f32 %v488, %v987
        %v1004 = vmul.f32 %v489, %v987
        %v1005 = vmul.f32 %v490, %v988
        %v1006 = vmul.f32 %v491, %v988
        %v1007 = vmul.f32 %v492, %v989
        %v1008 = vmul.f32 %v493, %v989
        %v1009 = vmul.f32 %v494, %v990
        %v1010 = vmul.f32 %v495, %v990
        %v1011 = vmul.f32 %v496, %v991
        %v1012 = vmul.f32 %v497, %v991
        %v1013 = vmul.f32 %v498, %v992
        %v1014 = vmul.f32 %v499, %v992
        %v1015 = vmul.f32 %v500, %v993
        %v1016 = vmul.f32 %v501, %v993
        %v1017 = vmul.f32 %v502, %v994
        %v1018 = vmul.f32 %v503, %v994
        %1019 = vst [vmem:[%s485] sm:$0xff] %v1003
        %1020 = vst [vmem:[%s485 + $0x8] sm:$0xff] %v1004
        %1021 = vst [vmem:[%s485 + $0x10] sm:$0xff] %v1005
        %1022 = vst [vmem:[%s485 + $0x18] sm:$0xff] %v1006
        %1023 = vst [vmem:[%s485 + $0x20] sm:$0xff] %v1007
        %1024 = vst [vmem:[%s485 + $0x28] sm:$0xff] %v1008
        %1025 = vst [vmem:[%s485 + $0x30] sm:$0xff] %v1009
        %1026 = vst [vmem:[%s485 + $0x38] sm:$0xff] %v1010
        %1027 = vst [vmem:[%s485 + $0x40] sm:$0xff] %v1011
        %1028 = vst [vmem:[%s485 + $0x48] sm:$0xff] %v1012
        %1029 = vst [vmem:[%s485 + $0x50] sm:$0xff] %v1013
        %1030 = vst [vmem:[%s485 + $0x58] sm:$0xff] %v1014
        %1031 = vst [vmem:[%s485 + $0x60] sm:$0xff] %v1015
        %1032 = vst [vmem:[%s485 + $0x68] sm:$0xff] %v1016
        %1033 = vst [vmem:[%s485 + $0x70] sm:$0xff] %v1017
        %1034 = vst [vmem:[%s485 + $0x78] sm:$0xff] %v1018
        %s1035 = sand.u32 %s260, 1
        %s1036 = scalar_lea.sflag [#allocation4], %s1035
        %s1037 = sand.u32 %s260, 1
        %s1038 = smul.addr %s1037, 128
        %s1039 = scalar_lea.vmem [#allocation13], %s1038
        // Predicated region
        $region85: #{tpu_custom_call.1} parent=59 // pred_check
          %p1040 = pneg %p270
        $region86: #{tpu_custom_call.1} parent=59 // pred_check_branch
          %1042 = sbr.rel (%p1040) target = $region88
        $region87: #{tpu_custom_call.1} parent=59 // pred_region
          %s1043 = smul.u32 8, %s32
          %1045 = vsyncadd %s1036, 0
          %s1046 = smul.addr %s1043, 2
          %s1047 = smul.addr %s1046, 8
          %s1048 = scalar_lea.hbm %s10, %s1047
          %s1049 = sshll.u32 %s1039, 4
          %s1050 = int_to_ptr.vmem [resolvable:$true] %s1049
          %s1051 = sshll.u32 %s1048, 4
          %s1052 = int_to_ptr.hbm [resolvable:$true] %s1051
          %1057 = dma.vmem_to_hbm [thread:$0]  %s1050, 2048, %s1052, %s1036, 128, 128, 8
        $region88: #{tpu_custom_call.1} parent=59 // pred_fallthru
          _
      $region60: #{tpu_custom_call.1} parent=5 // pred_fallthru
        _
      %p1058 = scmp.le.s32.totalorder 2, %s27
      // Predicated region
      $region89: #{tpu_custom_call.1} parent=5 // pred_check
        %p1059 = pneg %p1058
      $region90: #{tpu_custom_call.1} parent=5 // pred_check_branch
        %1061 = sbr.rel (%p1059) target = $region92
      $region91: #{tpu_custom_call.1} parent=5 // pred_region
        %s1062 = ssub.s32 %s27, 2
        // Predicated region
        $region93: #{tpu_custom_call.1} parent=91 // pred_check
          %p1063 = pneg %p276
        $region94: #{tpu_custom_call.1} parent=91 // pred_check_branch
          %1065 = sbr.rel (%p1063) target = $region96
        $region95: #{tpu_custom_call.1} parent=91 // pred_region
          %s1066 = sand.u32 %s261, 1
          %s1067 = scalar_lea.sflag [#allocation4], %s1066
          %s1068 = sand.u32 %s261, 1
          %s1069 = smul.addr %s1068, 128
          %s1070 = scalar_lea.vmem [#allocation13], %s1069
          %1072 = dma.done %s1067, 2048
        $region96: #{tpu_custom_call.1} parent=91 // pred_fallthru
          _
      $region92: #{tpu_custom_call.1} parent=5 // pred_fallthru
        _
    $region6: #{tpu_custom_call.1} parent=1 // loop_footer
      %s31 = sadd.s32 1, %s27
    $region7: #{tpu_custom_call.1} parent=1 // loop_footer_branch
      %26 = sbr.rel target = $region3
    $region8: #{tpu_custom_call.1} parent=1 // loop_exit
      _
    %1073 = vsyncpa [#allocation3], 1
    %s1074 = scalar_lea.sflag [#allocation3], 1
    %1075 = vsyncpa %s1074, 1
    %1076 = vsyncpa [#allocation6], 1
    %s1077 = scalar_lea.sflag [#allocation6], 1
    %1078 = vsyncpa %s1077, 1
    %1079 = vsyncpa [#allocation9], 1
    %1080 = vsyncpa [#allocation12], 1
    %1081 = vsyncpa [#allocation4], 1
    %s1082 = scalar_lea.sflag [#allocation4], 1
    %1083 = vsyncpa %s1082, 1

</llo_original>
